<compile_context>
chip_gen: v7x
topology: tpu7x:2x2x1
jax: 0.10.0
libtpu: 0.0.40
codegen_flags: <defaults>
</compile_context>

<pallas_src>
import functools

import jax
import jax.numpy as jnp
from jax.experimental import pallas as pl
from jax.experimental.pallas import tpu as pltpu


def _implicit_a_kernel(b_ref, x_ref, o_ref, *, block_c):
    # b_ref : (c_pad, 1) full per-channel bias, resident in VMEM across the grid.
    # x_ref / o_ref : (block_c, block_l) tile of the flattened (N, C, H*W) tensor.
    if b_ref.shape[0] == block_c:
        # Single channel-block: the whole bias is the slice (no dynamic indexing).
        b = b_ref[...]
    else:
        # block_c is a multiple of 8 here, so this is an aligned sublane slice.
        c = pl.program_id(1)
        b = b_ref[pl.ds(c * block_c, block_c), :]          # (block_c, 1)
    o_ref[...] = (x_ref[...] + b).astype(o_ref.dtype)      # lane-broadcast add (VPU)


def _round_up(x, m):
    return ((x + m - 1) // m) * m


def _choose_tiles(C, HW, itemsize):
    # Lane tile: multiple of 128, as wide as possible (lane-dense vst, long DMAs),
    # capped so one block stays ~<= 1 MiB -> double-buffered in+out tiles fit
    # comfortably under the 16 MiB (v5e) / 32 MiB (v6e, v7x) scoped VMEM defaults.
    block_l = min(_round_up(HW, 128), 2048)
    target_bytes = 1 << 20
    rows = max(1, target_bytes // (block_l * itemsize))
    if rows >= C:
        block_c = C                       # full-channel block is always layout-legal
    else:
        block_c = max(8, (rows // 8) * 8)  # sublane block dim must be a multiple of 8
    return block_c, block_l


def implicit_a(x, implicit):
    """ImplicitA forward: implicit (1, C, 1, 1) + x (N, C, H, W)."""
    N, C, H, W = x.shape
    assert implicit.shape == (1, C, 1, 1)
    HW = H * W

    # Match PyTorch type-promotion semantics (e.g. fp32 bias + bf16 x -> fp32).
    out_dtype = jnp.promote_types(x.dtype, implicit.dtype)
    block_c, block_l = _choose_tiles(C, HW, jnp.dtype(out_dtype).itemsize)

    grid_c = pl.cdiv(C, block_c)
    grid_l = pl.cdiv(HW, block_l)

    # Bias stays resident in VMEM for the whole grid; pad the channel rows so the
    # in-kernel slice of the last (partial) channel block never reads OOB.
    c_pad = grid_c * block_c
    bias = implicit.reshape(C, 1)
    if c_pad != C:
        bias = jnp.pad(bias, ((0, c_pad - C), (0, 0)))

    # Flatten spatial dims so the lane axis is H*W (free, contiguous reshape).
    x3 = x.reshape(N, C, HW)

    out3 = pl.pallas_call(
        functools.partial(_implicit_a_kernel, block_c=block_c),
        out_shape=jax.ShapeDtypeStruct((N, C, HW), out_dtype),
        grid_spec=pltpu.PrefetchScalarGridSpec(
            num_scalar_prefetch=0,
            grid=(N, grid_c, grid_l),
            in_specs=[
                # Full-array bias block: identical block index every step ->
                # loaded once, kept resident, no per-step DMA.
                pl.BlockSpec((c_pad, 1), lambda n, c, l: (0, 0)),
                # Activation tile: many channels x wide lane chunk per step.
                pl.BlockSpec(
                    (pl.Squeezed(), block_c, block_l),
                    lambda n, c, l: (n, c, l),
                ),
            ],
            out_specs=pl.BlockSpec(
                (pl.Squeezed(), block_c, block_l),
                lambda n, c, l: (n, c, l),
            ),
        ),
        # Every output block is written exactly once -> all axes are parallel
        # (lets v7x shard the grid across both TensorCores).
        compiler_params=pltpu.CompilerParams(
            dimension_semantics=("parallel", "parallel", "parallel")
        ),
    )(bias, x3)

    return out3.reshape(N, C, H, W)


if __name__ == "__main__":
    # Small shapes consistent with the module's forward: NCHW input.
    N, C, H, W = 2, 4, 16, 16
    key = jax.random.PRNGKey(0)
    kx, kb = jax.random.split(key)

    x = jax.random.normal(kx, (N, C, H, W), dtype=jnp.float32)
    # Deterministic init matching nn.init.normal_(mean=0.0, std=0.02)
    implicit = 0.0 + 0.02 * jax.random.normal(kb, (1, C, 1, 1), dtype=jnp.float32)

    out = implicit_a(x, implicit)
    out = jax.block_until_ready(out)

    ref = implicit + x  # broadcast-add reference
    assert out.shape == (N, C, H, W)
    assert out.dtype == ref.dtype
    assert jnp.allclose(out, ref, atol=1e-6), "mismatch vs reference"
    print("KERNEL_OK")
</pallas_src>

<mosaic_0001>
module attributes {stable_mosaic.version = 11 : i64} {
  func.func @_implicit_a_kernel(%arg0: i32, %arg1: i32, %arg2: i32, %arg3: memref<4x1xf32, #tpu.memory_space<vmem>>, %arg4: memref<1x4x256xf32, #tpu.memory_space<vmem>>, %arg5: memref<1x4x256xf32, #tpu.memory_space<vmem>>) attributes {dimension_semantics = [#tpu.dimension_semantics<parallel>, #tpu.dimension_semantics<parallel>, #tpu.dimension_semantics<parallel>], iteration_bounds = array<i64: 2, 1, 1>, scalar_prefetch = 0 : i64, scratch_operands = 0 : i64, tpu.core_type = #tpu.core_type<tc>, window_params = [{pipeline_mode = #tpu.pipeline_mode<synchronous>, transform_indices = @transform_0, window_bounds = array<i64: 4, 1>}, {transform_indices = @transform_1, window_bounds = array<i64: 1, 4, 256>}, {transform_indices = @transform_2, window_bounds = array<i64: 1, 4, 256>}]} {
    %c0 = arith.constant 0 : index
    %c0_0 = arith.constant 0 : index
    %0 = vector.load %arg3[%c0, %c0_0] : memref<4x1xf32, #tpu.memory_space<vmem>>, vector<4x1xf32>
    %c0_1 = arith.constant 0 : index
    %c0_2 = arith.constant 0 : index
    %c0_3 = arith.constant 0 : index
    %1 = vector.load %arg4[%c0_1, %c0_2, %c0_3] : memref<1x4x256xf32, #tpu.memory_space<vmem>>, vector<1x4x256xf32>
    %2 = vector.shape_cast %1 : vector<1x4x256xf32> to vector<4x256xf32>
    %3 = vector.broadcast %0 : vector<4x1xf32> to vector<4x256xf32>
    %4 = arith.addf %2, %3 : vector<4x256xf32>
    %c0_4 = arith.constant 0 : index
    %c0_5 = arith.constant 0 : index
    %c0_6 = arith.constant 0 : index
    %5 = vector.load %arg5[%c0_4, %c0_5, %c0_6] : memref<1x4x256xf32, #tpu.memory_space<vmem>>, vector<1x4x256xf32>
    %6 = vector.shape_cast %5 : vector<1x4x256xf32> to vector<4x256xf32>
    %7 = vector.shape_cast %4 : vector<4x256xf32> to vector<1x4x256xf32>
    tpu.vector_store %arg5[%c0_4, %c0_5, %c0_6], %7 {strides = array<i32>} : memref<1x4x256xf32, #tpu.memory_space<vmem>>, vector<1x4x256xf32>,
    return
  }
  func.func @transform_0(%arg0: i32, %arg1: i32, %arg2: i32) -> (i32, i32) {
    %c0_i32 = arith.constant 0 : i32
    %c0_i32_0 = arith.constant 0 : i32
    %c0_i32_1 = arith.constant 0 : i32
    return %c0_i32, %c0_i32_0 : i32, i32
  }
  func.func @transform_1(%arg0: i32, %arg1: i32, %arg2: i32) -> (i32, i32, i32) {
    %c0_i32 = arith.constant 0 : i32
    return %arg0, %arg1, %arg2 : i32, i32, i32
  }
  func.func @transform_2(%arg0: i32, %arg1: i32, %arg2: i32) -> (i32, i32, i32) {
    %c0_i32 = arith.constant 0 : i32
    return %arg0, %arg1, %arg2 : i32, i32, i32
  }
}

</mosaic_0001>

<llo_original>
// kernel: tpu_custom_call.1
$region0: #{tpu_custom_call.1}
  #allocation0 [shape = 'u32[]', space=smem, size = 0x4, offset = 0x4, fixed_abs, tag = 'smem constant byte address 0x4 - core index']
  #allocation1 [shape = 'u32[144,128]{1,0:T(1,128)}', space=vmem, size = 0x12000, scoped, tag = 'internal scratch']
  %s0 = inlined_call_operand.vmem [shape: f32[4,1], index: 0, kind: input, shape index: {}]
  %s1 = inlined_call_operand.hbm [shape: f32[2,4,256], index: 1, kind: input, shape index: {}]
  %s2 = inlined_call_operand.hbm [shape: f32[2,4,256], index: 2, kind: output, shape index: {}]
  %s3 = sld [smem:[#allocation0]]
  $region45: #{tpu_custom_call.1} parent=0
    _
  %s5 = ssub.s32 1, %s3
  %s6 = scalar_select 0, %s5, %s3
  $region1: #{tpu_custom_call.1} parent=0
    #allocation2 [shape = 'u8[8192]{0}', space=vmem, size = 0x2000, scoped, tag = 'input window, operand 1']
    #allocation3 [shape = 's32[2]{0}', space=sflag, size = 0x8, scoped, tag = 'scoped memory for tpu_custom_call.1']
    #allocation4 [shape = 's32[2]{0}', space=sflag, size = 0x8, scoped, tag = 'scoped memory for tpu_custom_call.1']
    #allocation5 [shape = 'u8[8192]{0}', space=vmem, size = 0x2000, scoped, tag = 'output window, operand 0']
    %7 = vsyncpa [#allocation3], 0
    %s8 = scalar_lea.sflag [#allocation3], 1
    %9 = vsyncpa %s8, 0
    %10 = vsyncpa [#allocation4], 0
    %s11 = scalar_lea.sflag [#allocation4], 1
    %12 = vsyncpa %s11, 0
    loop: start=0, step=1, limit=4
    $region2: #{tpu_custom_call.1} parent=1 // loop_pre_header
      _
    $region3: #{tpu_custom_call.1} parent=1 // loop_header
      %s14 = sphi 0, %s18
      %p15 = scmp.ge.s32.totalorder %s14, 4
      %s21 = sphi 0, %s40
      %s22 = sphi 0, %s36
      %s23 = sphi 0, %s32
      %s24 = sphi 0, %s21
      %s25 = sphi 0, %s22
      %s26 = sphi 0, %s23
      %s27 = sphi 0, %s24
      %s28 = sphi 0, %s25
      %s29 = sphi 0, %s26
      %s41 = sphi 0, %s41
      %s43 = sphi 0, %s41
      %s44 = sphi 0, %s43
      %s58 = sphi 0, %s44
      %s68 = sphi 0, %s70
      %s71 = sphi 0, %s68
      %s72 = sphi 0, %s71
      %s88 = sphi 0, %s72
      %s98 = sphi 0, %s100
      %s101 = sphi 0, %s98
      %s102 = sphi 0, %s101
      %s118 = sphi 0, %s102
    $region4: #{tpu_custom_call.1} parent=1 // loop_header_branch
      %17 = sbr.rel (%p15) target = $region8
    $region5: #{tpu_custom_call.1} parent=1 // loop_body
      %s19 = ssub.s32 %s14, 1
      %s20 = ssub.s32 %s14, 2
      %s30 = sadd.s32 1, %s23
      %p31 = scmp.ge.s32.totalorder %s30, 1
      %s32 = scalar_select %p31, 0, %s30
      %s33 = sadd.s32 1, %s22
      %s34 = scalar_select %p31, %s33, %s22
      %p35 = scmp.ge.s32.totalorder %s34, 1
      %s36 = scalar_select %p35, 0, %s34
      %s37 = sadd.s32 1, %s21
      %s38 = scalar_select %p35, %s37, %s21
      %p39 = scmp.ge.s32.totalorder %s38, 2
      %s40 = scalar_select %p39, 0, %s38
      %s42 = sadd.s32 %s41, 1
      %p45 = scmp.eq.s32.totalorder %s14, 1
      %p46 = scmp.ne.s32.totalorder %s41, %s43
      %p47 = scmp.eq.s32.totalorder %s14, 0
      %p48 = por %p46, %p47
      %p49 = scmp.ne.s32.totalorder %s41, %s43
      %p50 = scmp.eq.s32.totalorder %s19, 1
      %p51 = por %p49, %p50
      %p52 = scmp.ne.s32.totalorder %s43, %s44
      %p53 = scmp.eq.s32.totalorder %s19, 0
      %p54 = por %p52, %p53
      %p55 = scmp.ne.s32.totalorder %s43, %s44
      %p56 = scmp.eq.s32.totalorder %s20, 1
      %p57 = por %p55, %p56
      %p59 = scmp.ne.s32.totalorder %s44, %s58
      %p60 = scmp.eq.s32.totalorder %s20, 0
      %p61 = por %p59, %p60
      %s62 = ssub.s32 %s21, %s40
      %s63 = ssub.s32 %s22, %s36
      %s64 = sor.u32 %s62, %s63
      %s65 = ssub.s32 %s23, %s32
      %s66 = sor.u32 %s64, %s65
      %p67 = scmp.eq.s32.totalorder %s66, 0
      %s69 = sadd.s32 %s68, 1
      %s70 = scalar_select %p67, %s68, %s69
      %p73 = pneg %p67
      %p74 = scmp.eq.s32.totalorder %s14, 1
      %p75 = por %p73, %p74
      %p76 = scmp.ne.s32.totalorder %s68, %s71
      %p77 = scmp.eq.s32.totalorder %s14, 0
      %p78 = por %p76, %p77
      %p79 = scmp.ne.s32.totalorder %s68, %s71
      %p80 = scmp.eq.s32.totalorder %s19, 1
      %p81 = por %p79, %p80
      %p82 = scmp.ne.s32.totalorder %s71, %s72
      %p83 = scmp.eq.s32.totalorder %s19, 0
      %p84 = por %p82, %p83
      %p85 = scmp.ne.s32.totalorder %s71, %s72
      %p86 = scmp.eq.s32.totalorder %s20, 1
      %p87 = por %p85, %p86
      %p89 = scmp.ne.s32.totalorder %s72, %s88
      %p90 = scmp.eq.s32.totalorder %s20, 0
      %p91 = por %p89, %p90
      %s92 = ssub.s32 %s21, %s40
      %s93 = ssub.s32 %s22, %s36
      %s94 = sor.u32 %s92, %s93
      %s95 = ssub.s32 %s23, %s32
      %s96 = sor.u32 %s94, %s95
      %p97 = scmp.eq.s32.totalorder %s96, 0
      %s99 = sadd.s32 %s98, 1
      %s100 = scalar_select %p97, %s98, %s99
      %p103 = pneg %p97
      %p104 = scmp.eq.s32.totalorder %s14, 1
      %p105 = por %p103, %p104
      %p106 = scmp.ne.s32.totalorder %s98, %s101
      %p107 = scmp.eq.s32.totalorder %s14, 0
      %p108 = por %p106, %p107
      %p109 = scmp.ne.s32.totalorder %s98, %s101
      %p110 = scmp.eq.s32.totalorder %s19, 1
      %p111 = por %p109, %p110
      %p112 = scmp.ne.s32.totalorder %s101, %s102
      %p113 = scmp.eq.s32.totalorder %s19, 0
      %p114 = por %p112, %p113
      %p115 = scmp.ne.s32.totalorder %s101, %s102
      %p116 = scmp.eq.s32.totalorder %s20, 1
      %p117 = por %p115, %p116
      %p119 = scmp.ne.s32.totalorder %s102, %s118
      %p120 = scmp.eq.s32.totalorder %s20, 0
      %p121 = por %p119, %p120
      %p122 = scmp.le.s32.totalorder 1, %s14
      %p123 = scmp.lt.s32.totalorder %s14, 3
      %p124 = pnand %p122, %p123
      %p125 = pneg %p124
      // Predicated region
      $region9: #{tpu_custom_call.1} parent=5 // pred_check
        _
      $region10: #{tpu_custom_call.1} parent=5 // pred_check_branch
        %127 = sbr.rel (%p124) target = $region12
      $region11: #{tpu_custom_call.1} parent=5 // pred_region
        %s128 = ssub.s32 %s14, 1
        // Predicated region
        $region13: #{tpu_custom_call.1} parent=11 // pred_check
          %p129 = pneg %p54
        $region14: #{tpu_custom_call.1} parent=11 // pred_check_branch
          %131 = sbr.rel (%p129) target = $region16
        $region15: #{tpu_custom_call.1} parent=11 // pred_region
          _
        $region16: #{tpu_custom_call.1} parent=11 // pred_fallthru
          _
      $region12: #{tpu_custom_call.1} parent=5 // pred_fallthru
        _
      %p132 = scmp.lt.s32.totalorder %s14, 2
      // Predicated region
      $region17: #{tpu_custom_call.1} parent=5 // pred_check
        %p133 = pneg %p132
      $region18: #{tpu_custom_call.1} parent=5 // pred_check_branch
        %135 = sbr.rel (%p133) target = $region20
      $region19: #{tpu_custom_call.1} parent=5 // pred_region
        // Predicated region
        $region21: #{tpu_custom_call.1} parent=19 // pred_check
          %p136 = pneg %p78
        $region22: #{tpu_custom_call.1} parent=19 // pred_check_branch
          %138 = sbr.rel (%p136) target = $region24
        $region23: #{tpu_custom_call.1} parent=19 // pred_region
          %s139 = sand.u32 %s68, 1
          %s140 = scalar_lea.sflag [#allocation3], %s139
          %s141 = sand.u32 %s68, 1
          %s142 = smul.addr %s141, 8
          %s143 = scalar_lea.vmem [#allocation2], %s142
          %s144 = smul.u32 2, %s23
          %s146 = ssub.s32 128, 128
          %147 = vsyncadd %s140, %s146
          %s148 = smul.addr %s22, 2
          %s149 = sadd.s32 %s144, %s148
          %s150 = smul.addr %s21, 2
          %s151 = sadd.s32 %s149, %s150
          %s152 = smul.addr %s151, 64
          %s153 = scalar_lea.hbm %s1, %s152
          %s155 = sshll.u32 %s143, 4
          %s156 = int_to_ptr.vmem [resolvable:$true] %s155
          %158 = dma.hbm_to_vmem [thread:$0]  %s153, 128, %s156, %s140
        $region24: #{tpu_custom_call.1} parent=19 // pred_fallthru
          _
      $region20: #{tpu_custom_call.1} parent=5 // pred_fallthru
        _
      %p159 = scmp.le.s32.totalorder 1, %s14
      %p160 = scmp.lt.s32.totalorder %s14, 3
      %p161 = pnand %p159, %p160
      %p162 = pneg %p161
      // Predicated region
      $region25: #{tpu_custom_call.1} parent=5 // pred_check
        _
      $region26: #{tpu_custom_call.1} parent=5 // pred_check_branch
        %164 = sbr.rel (%p161) target = $region28
      $region27: #{tpu_custom_call.1} parent=5 // pred_region
        %s165 = ssub.s32 %s14, 1
        %s166 = sand.u32 %s71, 1
        %s167 = scalar_lea.sflag [#allocation3], %s166
        %s168 = sand.u32 %s71, 1
        %s169 = smul.addr %s168, 8
        %s170 = scalar_lea.vmem [#allocation2], %s169
        // Predicated region
        $region29: #{tpu_custom_call.1} parent=27 // pred_check
          %p171 = pneg %p84
        $region30: #{tpu_custom_call.1} parent=27 // pred_check_branch
          %173 = sbr.rel (%p171) target = $region32
        $region31: #{tpu_custom_call.1} parent=27 // pred_region
          %174 = dma.done %s167, 128
        $region32: #{tpu_custom_call.1} parent=27 // pred_fallthru
          _
        %p175 = pneg %p54
        %p176 = pneg %p51
        %s177 = sand.u32 %s71, 1
        %s178 = scalar_lea.sflag [#allocation3], %s177
        %s179 = sand.u32 %s71, 1
        %s180 = smul.addr %s179, 8
        %s181 = scalar_lea.vmem [#allocation2], %s180
        %p182 = pneg %p84
        %p183 = pneg %p81
        %p184 = pneg %p114
        %p185 = pneg %p111
        %s186 = sand.u32 %s101, 1
        %s187 = scalar_lea.sflag [#allocation4], %s186
        %s188 = sand.u32 %s101, 1
        %s189 = smul.addr %s188, 8
        %s190 = scalar_lea.vmem [#allocation5], %s189
        %s191 = smul.u32 2, %s26
        %s192 = smul.u32 2, %s26
        %v193 = vld [vmem:[%s0] sm:$0xf]
        %v194 = vld [vmem:[%s170] sm:$0xff]
        %196 = vset.pattern.permute.xlu0 0
        %197 = vperm.xlu0 %196, %v193
        %v198 = vpop.permute.xlu0 %197
        %v200 = vunpack.c.l.s4 839922192
        %v201 = vunpack.c.0.s8 %v200
        %v202 = vlaneseq
        %v203 = vshrl.u32 %v202, 7
        %v204 = vsub.s32 %v201, %v203
        %v205 = vrot.slane %v198, %v204
        %v207 = vadd.f32 %v194, %v205
        %208 = vst [vmem:[%s190] sm:$0xff] %v207
        %s209 = sand.u32 %s101, 1
        %s210 = scalar_lea.sflag [#allocation4], %s209
        %s211 = sand.u32 %s101, 1
        %s212 = smul.addr %s211, 8
        %s213 = scalar_lea.vmem [#allocation5], %s212
        // Predicated region
        $region33: #{tpu_custom_call.1} parent=27 // pred_check
          %p214 = pneg %p111
        $region34: #{tpu_custom_call.1} parent=27 // pred_check_branch
          %216 = sbr.rel (%p214) target = $region36
        $region35: #{tpu_custom_call.1} parent=27 // pred_region
          %s217 = smul.u32 2, %s26
          %s219 = ssub.s32 128, 128
          %220 = vsyncadd %s210, %s219
          %s221 = smul.addr %s25, 2
          %s222 = sadd.s32 %s217, %s221
          %s223 = smul.addr %s24, 2
          %s224 = sadd.s32 %s222, %s223
          %s225 = smul.addr %s224, 64
          %s226 = scalar_lea.hbm %s2, %s225
          %s228 = sshll.u32 %s213, 4
          %s229 = int_to_ptr.vmem [resolvable:$true] %s228
          %231 = dma.vmem_to_hbm [thread:$0]  %s229, 128, %s226, %s210
        $region36: #{tpu_custom_call.1} parent=27 // pred_fallthru
          _
      $region28: #{tpu_custom_call.1} parent=5 // pred_fallthru
        _
      %p232 = scmp.le.s32.totalorder 2, %s14
      // Predicated region
      $region37: #{tpu_custom_call.1} parent=5 // pred_check
        %p233 = pneg %p232
      $region38: #{tpu_custom_call.1} parent=5 // pred_check_branch
        %235 = sbr.rel (%p233) target = $region40
      $region39: #{tpu_custom_call.1} parent=5 // pred_region
        %s236 = ssub.s32 %s14, 2
        // Predicated region
        $region41: #{tpu_custom_call.1} parent=39 // pred_check
          %p237 = pneg %p117
        $region42: #{tpu_custom_call.1} parent=39 // pred_check_branch
          %239 = sbr.rel (%p237) target = $region44
        $region43: #{tpu_custom_call.1} parent=39 // pred_region
          %s240 = sand.u32 %s102, 1
          %s241 = scalar_lea.sflag [#allocation4], %s240
          %s242 = sand.u32 %s102, 1
          %s243 = smul.addr %s242, 8
          %s244 = scalar_lea.vmem [#allocation5], %s243
          %245 = dma.done %s241, 128
        $region44: #{tpu_custom_call.1} parent=39 // pred_fallthru
          _
      $region40: #{tpu_custom_call.1} parent=5 // pred_fallthru
        _
    $region6: #{tpu_custom_call.1} parent=1 // loop_footer
      %s18 = sadd.s32 1, %s14
    $region7: #{tpu_custom_call.1} parent=1 // loop_footer_branch
      %13 = sbr.rel target = $region3
    $region8: #{tpu_custom_call.1} parent=1 // loop_exit
      _
    %246 = vsyncpa [#allocation3], 1
    %s247 = scalar_lea.sflag [#allocation3], 1
    %248 = vsyncpa %s247, 1
    %249 = vsyncpa [#allocation4], 1
    %s250 = scalar_lea.sflag [#allocation4], 1
    %251 = vsyncpa %s250, 1

</llo_original>
